<compile_context>
chip_gen: v5e
topology: v5e:2x2
jax: 0.10.0
libtpu: 0.0.40
codegen_flags: <defaults>
</compile_context>

<pallas_src>
import math

import jax
import jax.numpy as jnp
from jax import lax
from jax.experimental import pallas as pl
from jax.experimental.pallas import tpu as pltpu

# ----------------------------- model dims -----------------------------------
B = 2          # batch
S = 8          # sequence length
D = 32         # n_embd
H = 4          # n_head
DH = D // H    # head dim
N = B * S      # fused row count (batch*seq)
EPS = 1e-5     # PyTorch LayerNorm default


# ----------------------------- Pallas kernel --------------------------------
def clip_layer_kernel(x_ref, mask_ref,
                      wqk_ref, bqk_ref,      # (D, 2D) bf16, (1, 2D) f32
                      wvo_ref, bvo_ref,      # (D, H*D) bf16, (1, H*D) f32
                      bo_ref,                # (1, D) f32
                      w1_ref, b1_ref,        # (D, 4D) bf16, (1, 4D) f32
                      w2_ref, b2_ref,        # (4D, D) bf16, (1, D) f32
                      o_ref):
    """Whole CLIP encoder layer, all B*S rows in one invocation."""
    x = x_ref[...]                                  # (N, D) f32

    def norm(v):
        # LayerNorm with the affine (gamma/beta) folded into the downstream
        # linear weights wrapper-side -> only mean/var/rsqrt in-kernel (f32).
        mu = jnp.mean(v, axis=-1, keepdims=True)
        c = v - mu
        var = jnp.mean(c * c, axis=-1, keepdims=True)
        return c * lax.rsqrt(var + EPS)

    # ---- layernorm_1 (affine folded into wqk / wvo) ----
    n1 = norm(x)
    n1b = n1.astype(jnp.bfloat16)                   # bf16 only at the MXU boundary

    # ---- fused Q|K projection: one (N,D)@(D,2D) matmul, heads fused ----
    qk = jnp.dot(n1b, wqk_ref[...],
                 preferred_element_type=jnp.float32) + bqk_ref[...]     # (N, 2D)
    # ---- fused value*out-proj, all heads: one (N,D)@(D,H*D) matmul ----
    vo = jnp.dot(n1b, wvo_ref[...],
                 preferred_element_type=jnp.float32) + bvo_ref[...]     # (N, H*D)

    mask_bias = mask_ref[...]                       # (N, N) additive 0 / -1e30
    attn = jnp.zeros((N, D), jnp.float32)
    for hh in range(H):                             # static unroll over heads
        qh = qk[:, hh * DH:(hh + 1) * DH]           # (N, DH) static lane slice
        kh = qk[:, D + hh * DH: D + (hh + 1) * DH]  # (N, DH)
        # scores: q . k^T (contraction on head dim, no explicit transpose)
        s = lax.dot_general(qh.astype(jnp.bfloat16), kh.astype(jnp.bfloat16),
                            (((1,), (1,)), ((), ())),
                            preferred_element_type=jnp.float32) + mask_bias   # (N, N)
        m = jnp.max(s, axis=-1, keepdims=True)
        e = jnp.exp(s - m)
        p = e * pl.reciprocal(jnp.sum(e, axis=-1, keepdims=True), approx=True)
        # per-head (value @ Wo) slab, bias already folded in BEFORE the P matmul
        voh = vo[:, hh * D:(hh + 1) * D]            # (N, D) static lane slice
        attn = attn + jnp.dot(p.astype(jnp.bfloat16), voh.astype(jnp.bfloat16),
                              preferred_element_type=jnp.float32)             # (N, D)

    y = x + attn + bo_ref[...]                      # residual 1 (+ out-proj bias)

    # ---- layernorm_2 (affine folded into w1/b1) + MLP ----
    n2 = norm(y)
    h1 = jnp.dot(n2.astype(jnp.bfloat16), w1_ref[...],
                 preferred_element_type=jnp.float32) + b1_ref[...]            # (N, 4D)
    h1 = h1 * jax.nn.sigmoid(jnp.float32(1.702) * h1)                         # QuickGELU (f32)
    h2 = jnp.dot(h1.astype(jnp.bfloat16), w2_ref[...],
                 preferred_element_type=jnp.float32) + b2_ref[...]            # (N, D)

    o_ref[...] = h2 + y                             # residual 2


# ----------------------------- wrapper ---------------------------------------
def _prepare_params(params):
    """Wrapper-side algebraic folds + lane-dense / bf16 weight slabs."""
    (ln1_g, ln1_b, wqkv, bqkv, wo, bo, ln2_g, ln2_b, w1, b1, w2, b2) = params
    scale = 1.0 / math.sqrt(DH)

    g1 = ln1_g.reshape(D, 1)                     # scales rows of the next linear
    wq, wk, wv = wqkv[:, :D], wqkv[:, D:2 * D], wqkv[:, 2 * D:]
    bq, bk, bv = bqkv[:, :D], bqkv[:, D:2 * D], bqkv[:, 2 * D:]

    # Fold LN1 affine into Q/K/V; fold 1/sqrt(DH) into Q.
    wq_f = (g1 * wq) * scale
    bq_f = (ln1_b @ wq + bq) * scale
    wk_f = g1 * wk
    bk_f = ln1_b @ wk + bk
    wqk = jnp.concatenate([wq_f, wk_f], axis=1)          # (D, 2D)
    bqk = jnp.concatenate([bq_f, bk_f], axis=1)          # (1, 2D)

    # Fold Wo into the value projection per head: Wvo_h = Wv_h' @ Wo_h.
    wv_f = g1 * wv                                       # (D, D)
    bv_f = ln1_b @ wv + bv                               # (1, D)
    wv_h = wv_f.reshape(D, H, DH)
    bv_h = bv_f.reshape(1, H, DH)
    wo_h = wo.reshape(H, DH, D)
    wvo = jnp.einsum("dhk,hkm->dhm", wv_h, wo_h).reshape(D, H * D)   # (D, H*D)
    bvo = jnp.einsum("ohk,hkm->ohm", bv_h, wo_h).reshape(1, H * D)   # (1, H*D)

    # Fold LN2 affine into linear_1.
    g2 = ln2_g.reshape(D, 1)
    w1_f = g2 * w1
    b1_f = ln2_b @ w1 + b1

    bf = jnp.bfloat16
    f32 = jnp.float32
    return (wqk.astype(bf), bqk.astype(f32),
            wvo.astype(bf), bvo.astype(f32),
            bo.astype(f32),
            w1_f.astype(bf), b1_f.astype(f32),
            w2.astype(bf), b2.astype(f32))


def clip_layer(x, params):
    Bb, Ss, Dd = x.shape
    n_rows = Bb * Ss
    x2 = x.reshape(n_rows, Dd).astype(jnp.float32)

    prepped = _prepare_params(params)

    # Block-diagonal causal additive mask (0 keep / -1e30 drop), built once.
    idx = jnp.arange(n_rows)
    same_seq = (idx[:, None] // Ss) == (idx[None, :] // Ss)
    causal_ok = idx[None, :] <= idx[:, None]
    mask_bias = jnp.where(same_seq & causal_ok, 0.0, -1e30).astype(jnp.float32)

    args = (x2, mask_bias) + prepped

    def full(a):
        nd = a.ndim
        return pl.BlockSpec(a.shape, lambda i, _nd=nd: (0,) * _nd)

    out2 = pl.pallas_call(
        clip_layer_kernel,
        out_shape=jax.ShapeDtypeStruct((n_rows, Dd), jnp.float32),
        grid_spec=pltpu.PrefetchScalarGridSpec(
            num_scalar_prefetch=0,
            grid=(1,),                               # single fused step
            in_specs=[full(a) for a in args],
            out_specs=pl.BlockSpec((n_rows, Dd), lambda i: (0, 0)),
        ),
        compiler_params=pltpu.CompilerParams(
            dimension_semantics=("arbitrary",)),
    )(*args)
    return out2.reshape(Bb, Ss, Dd)


# ----------------------------- pure-JAX reference -----------------------------
def reference(x, params):
    (ln1_g, ln1_b, wqkv, bqkv, wo, bo, ln2_g, ln2_b, w1, b1, w2, b2) = params

    def ln(v, g, b):
        mu = jnp.mean(v, axis=-1, keepdims=True)
        var = jnp.mean((v - mu) ** 2, axis=-1, keepdims=True)
        return (v - mu) / jnp.sqrt(var + EPS) * g[0] + b[0]

    def one(xb):  # xb: (S, D)
        h = ln(xb, ln1_g, ln1_b)
        qkv = h @ wqkv + bqkv[0]
        q, k, v = jnp.split(qkv, 3, axis=-1)
        qh = q.reshape(S, H, DH).transpose(1, 0, 2)
        kh = k.reshape(S, H, DH).transpose(1, 0, 2)
        vh = v.reshape(S, H, DH).transpose(1, 0, 2)
        s = jnp.einsum("hqd,hkd->hqk", qh, kh)
        mask = jnp.triu(jnp.ones((S, S), bool), 1)
        s = jnp.where(mask[None], -1e30, s) / math.sqrt(DH)
        p = jax.nn.softmax(s, axis=-1)
        o = jnp.einsum("hqk,hkd->hqd", p, vh).transpose(1, 0, 2).reshape(S, D)
        o = o @ wo + bo[0]
        xb = xb + o
        res = xb
        h = ln(xb, ln2_g, ln2_b)
        h = h @ w1 + b1[0]
        h = h * jax.nn.sigmoid(1.702 * h)
        h = h @ w2 + b2[0]
        return h + res

    return jax.vmap(one)(x)


# ----------------------------- main -------------------------------------------
if __name__ == "__main__":
    key = jax.random.PRNGKey(0)
    ks = jax.random.split(key, 16)

    x = jax.random.normal(ks[0], (B, S, D), jnp.float32)

    # Deterministic synthetic parameters (Linear weights stored as (in, out)).
    ln1_g = (1.0 + 0.1 * jax.random.normal(ks[1], (1, D))).astype(jnp.float32)
    ln1_b = (0.1 * jax.random.normal(ks[2], (1, D))).astype(jnp.float32)
    wqkv = (0.05 * jax.random.normal(ks[3], (D, 3 * D))).astype(jnp.float32)
    bqkv = (0.05 * jax.random.normal(ks[4], (1, 3 * D))).astype(jnp.float32)
    wo = (0.05 * jax.random.normal(ks[5], (D, D))).astype(jnp.float32)
    bo = (0.05 * jax.random.normal(ks[6], (1, D))).astype(jnp.float32)
    ln2_g = (1.0 + 0.1 * jax.random.normal(ks[7], (1, D))).astype(jnp.float32)
    ln2_b = (0.1 * jax.random.normal(ks[8], (1, D))).astype(jnp.float32)
    w1 = (0.05 * jax.random.normal(ks[9], (D, 4 * D))).astype(jnp.float32)
    b1 = (0.05 * jax.random.normal(ks[10], (1, 4 * D))).astype(jnp.float32)
    w2 = (0.05 * jax.random.normal(ks[11], (4 * D, D))).astype(jnp.float32)
    b2 = (0.05 * jax.random.normal(ks[12], (1, D))).astype(jnp.float32)

    params = (ln1_g, ln1_b, wqkv, bqkv, wo, bo, ln2_g, ln2_b, w1, b1, w2, b2)

    out = jax.block_until_ready(clip_layer(x, params))
    ref = jax.block_until_ready(reference(x, params))

    assert out.shape == (B, S, D) and out.dtype == jnp.float32
    # Tolerance covers (a) the EUP approximate reciprocal in the softmax
    # denominator and (b) bf16 matmul operands (per v6e/v7x perf guidance);
    # observed/expected error is ~1e-3, well inside 2e-2.
    assert jnp.allclose(out, ref, atol=2e-2, rtol=2e-2), (
        f"max abs err = {jnp.max(jnp.abs(out - ref))}")
    print("KERNEL_OK")
</pallas_src>

<mosaic_0001>
module attributes {stable_mosaic.version = 11 : i64} {
  func.func @clip_layer_kernel(%arg0: i32, %arg1: memref<16x32xf32, #tpu.memory_space<vmem>>, %arg2: memref<16x16xf32, #tpu.memory_space<vmem>>, %arg3: memref<32x64xbf16, #tpu.memory_space<vmem>>, %arg4: memref<1x64xf32, #tpu.memory_space<vmem>>, %arg5: memref<32x128xbf16, #tpu.memory_space<vmem>>, %arg6: memref<1x128xf32, #tpu.memory_space<vmem>>, %arg7: memref<1x32xf32, #tpu.memory_space<vmem>>, %arg8: memref<32x128xbf16, #tpu.memory_space<vmem>>, %arg9: memref<1x128xf32, #tpu.memory_space<vmem>>, %arg10: memref<128x32xbf16, #tpu.memory_space<vmem>>, %arg11: memref<1x32xf32, #tpu.memory_space<vmem>>, %arg12: memref<16x32xf32, #tpu.memory_space<vmem>>) attributes {dimension_semantics = [#tpu.dimension_semantics<arbitrary>], iteration_bounds = array<i64: 1>, scalar_prefetch = 0 : i64, scratch_operands = 0 : i64, tpu.core_type = #tpu.core_type<tc>, window_params = [{pipeline_mode = #tpu.pipeline_mode<synchronous>, transform_indices = @transform_0, window_bounds = array<i64: 16, 32>}, {pipeline_mode = #tpu.pipeline_mode<synchronous>, transform_indices = @transform_1, window_bounds = array<i64: 16, 16>}, {pipeline_mode = #tpu.pipeline_mode<synchronous>, transform_indices = @transform_2, window_bounds = array<i64: 32, 64>}, {pipeline_mode = #tpu.pipeline_mode<synchronous>, transform_indices = @transform_3, window_bounds = array<i64: 1, 64>}, {pipeline_mode = #tpu.pipeline_mode<synchronous>, transform_indices = @transform_4, window_bounds = array<i64: 32, 128>}, {pipeline_mode = #tpu.pipeline_mode<synchronous>, transform_indices = @transform_5, window_bounds = array<i64: 1, 128>}, {pipeline_mode = #tpu.pipeline_mode<synchronous>, transform_indices = @transform_6, window_bounds = array<i64: 1, 32>}, {pipeline_mode = #tpu.pipeline_mode<synchronous>, transform_indices = @transform_7, window_bounds = array<i64: 32, 128>}, {pipeline_mode = #tpu.pipeline_mode<synchronous>, transform_indices = @transform_8, window_bounds = array<i64: 1, 128>}, {pipeline_mode = #tpu.pipeline_mode<synchronous>, transform_indices = @transform_9, window_bounds = array<i64: 128, 32>}, {pipeline_mode = #tpu.pipeline_mode<synchronous>, transform_indices = @transform_10, window_bounds = array<i64: 1, 32>}, {pipeline_mode = #tpu.pipeline_mode<synchronous>, transform_indices = @transform_11, window_bounds = array<i64: 16, 32>}]} {
    %c0 = arith.constant 0 : index
    %c0_0 = arith.constant 0 : index
    %0 = vector.load %arg1[%c0, %c0_0] : memref<16x32xf32, #tpu.memory_space<vmem>>, vector<16x32xf32>
    %cst = arith.constant dense<0.000000e+00> : vector<16xf32>
    %1 = vector.multi_reduction <add>, %0, %cst [1] : vector<16x32xf32> to vector<16xf32>
    %2 = vector.shape_cast %1 : vector<16xf32> to vector<16x1xf32>
    %cst_1 = arith.constant 3.200000e+01 : f32
    %3 = vector.broadcast %cst_1 : f32 to vector<16x1xf32>
    %4 = arith.divf %2, %3 : vector<16x1xf32>
    %5 = vector.broadcast %4 : vector<16x1xf32> to vector<16x32xf32>
    %6 = arith.subf %0, %5 : vector<16x32xf32>
    %7 = arith.mulf %6, %6 : vector<16x32xf32>
    %cst_2 = arith.constant dense<0.000000e+00> : vector<16xf32>
    %8 = vector.multi_reduction <add>, %7, %cst_2 [1] : vector<16x32xf32> to vector<16xf32>
    %9 = vector.shape_cast %8 : vector<16xf32> to vector<16x1xf32>
    %cst_3 = arith.constant 3.200000e+01 : f32
    %10 = vector.broadcast %cst_3 : f32 to vector<16x1xf32>
    %11 = arith.divf %9, %10 : vector<16x1xf32>
    %cst_4 = arith.constant 9.99999974E-6 : f32
    %12 = vector.broadcast %cst_4 : f32 to vector<16x1xf32>
    %13 = arith.addf %11, %12 : vector<16x1xf32>
    %14 = math.rsqrt %13 : vector<16x1xf32>
    %15 = vector.broadcast %14 : vector<16x1xf32> to vector<16x32xf32>
    %16 = arith.mulf %6, %15 : vector<16x32xf32>
    %17 = arith.truncf %16 : vector<16x32xf32> to vector<16x32xbf16>
    %c0_5 = arith.constant 0 : index
    %c0_6 = arith.constant 0 : index
    %18 = vector.load %arg3[%c0_5, %c0_6] : memref<32x64xbf16, #tpu.memory_space<vmem>>, vector<32x64xbf16>
    %cst_7 = arith.constant dense<0.000000e+00> : vector<16x64xf32>
    %19 = tpu.matmul %17, %18, %cst_7 {dimension_numbers = #tpu.dot_dimension_numbers<[1], [0], [0], [1], [0, 0, 1, 1], [], []>} : vector<16x32xbf16>, vector<32x64xbf16>, vector<16x64xf32> -> vector<16x64xf32>
    %c0_8 = arith.constant 0 : index
    %c0_9 = arith.constant 0 : index
    %20 = vector.load %arg4[%c0_8, %c0_9] : memref<1x64xf32, #tpu.memory_space<vmem>>, vector<1x64xf32>
    %21 = vector.broadcast %20 : vector<1x64xf32> to vector<16x64xf32>
    %22 = arith.addf %19, %21 : vector<16x64xf32>
    %c0_10 = arith.constant 0 : index
    %c0_11 = arith.constant 0 : index
    %23 = vector.load %arg5[%c0_10, %c0_11] : memref<32x128xbf16, #tpu.memory_space<vmem>>, vector<32x128xbf16>
    %cst_12 = arith.constant dense<0.000000e+00> : vector<16x128xf32>
    %24 = tpu.matmul %17, %23, %cst_12 {dimension_numbers = #tpu.dot_dimension_numbers<[1], [0], [0], [1], [0, 0, 1, 1], [], []>} : vector<16x32xbf16>, vector<32x128xbf16>, vector<16x128xf32> -> vector<16x128xf32>
    %c0_13 = arith.constant 0 : index
    %c0_14 = arith.constant 0 : index
    %25 = vector.load %arg6[%c0_13, %c0_14] : memref<1x128xf32, #tpu.memory_space<vmem>>, vector<1x128xf32>
    %26 = vector.broadcast %25 : vector<1x128xf32> to vector<16x128xf32>
    %27 = arith.addf %24, %26 : vector<16x128xf32>
    %c0_15 = arith.constant 0 : index
    %c0_16 = arith.constant 0 : index
    %28 = vector.load %arg2[%c0_15, %c0_16] : memref<16x16xf32, #tpu.memory_space<vmem>>, vector<16x16xf32>
    %cst_17 = arith.constant 0.000000e+00 : f32
    %29 = vector.broadcast %cst_17 : f32 to vector<16x32xf32>
    %30 = vector.extract_strided_slice %22 {offsets = [0, 0], sizes = [16, 8], strides = [1, 1]} : vector<16x64xf32> to vector<16x8xf32>
    %31 = vector.extract_strided_slice %22 {offsets = [0, 32], sizes = [16, 8], strides = [1, 1]} : vector<16x64xf32> to vector<16x8xf32>
    %32 = arith.truncf %30 : vector<16x8xf32> to vector<16x8xbf16>
    %33 = arith.truncf %31 : vector<16x8xf32> to vector<16x8xbf16>
    %cst_18 = arith.constant dense<0.000000e+00> : vector<16x16xf32>
    %34 = tpu.matmul %32, %33, %cst_18 {dimension_numbers = #tpu.dot_dimension_numbers<[1], [1], [0], [0], [0, 0, 1, 0], [], []>} : vector<16x8xbf16>, vector<16x8xbf16>, vector<16x16xf32> -> vector<16x16xf32>
    %35 = arith.addf %34, %28 : vector<16x16xf32>
    %cst_19 = arith.constant dense<0xFF800000> : vector<16xf32>
    %36 = vector.multi_reduction <maximumf>, %35, %cst_19 [1] : vector<16x16xf32> to vector<16xf32>
    %37 = vector.shape_cast %36 : vector<16xf32> to vector<16x1xf32>
    %38 = vector.broadcast %37 : vector<16x1xf32> to vector<16x16xf32>
    %39 = arith.subf %35, %38 : vector<16x16xf32>
    %40 = math.exp %39 : vector<16x16xf32>
    %cst_20 = arith.constant dense<0.000000e+00> : vector<16xf32>
    %41 = vector.multi_reduction <add>, %40, %cst_20 [1] : vector<16x16xf32> to vector<16xf32>
    %42 = vector.shape_cast %41 : vector<16xf32> to vector<16x1xf32>
    %43 = tpu.reciprocal %42 {approx = true} : vector<16x1xf32> -> vector<16x1xf32>
    %44 = vector.broadcast %43 : vector<16x1xf32> to vector<16x16xf32>
    %45 = arith.mulf %40, %44 : vector<16x16xf32>
    %46 = vector.extract_strided_slice %27 {offsets = [0, 0], sizes = [16, 32], strides = [1, 1]} : vector<16x128xf32> to vector<16x32xf32>
    %47 = arith.truncf %45 : vector<16x16xf32> to vector<16x16xbf16>
    %48 = arith.truncf %46 : vector<16x32xf32> to vector<16x32xbf16>
    %cst_21 = arith.constant dense<0.000000e+00> : vector<16x32xf32>
    %49 = tpu.matmul %47, %48, %cst_21 {dimension_numbers = #tpu.dot_dimension_numbers<[1], [0], [0], [1], [0, 0, 1, 1], [], []>} : vector<16x16xbf16>, vector<16x32xbf16>, vector<16x32xf32> -> vector<16x32xf32>
    %50 = arith.addf %29, %49 : vector<16x32xf32>
    %51 = vector.extract_strided_slice %22 {offsets = [0, 8], sizes = [16, 8], strides = [1, 1]} : vector<16x64xf32> to vector<16x8xf32>
    %52 = vector.extract_strided_slice %22 {offsets = [0, 40], sizes = [16, 8], strides = [1, 1]} : vector<16x64xf32> to vector<16x8xf32>
    %53 = arith.truncf %51 : vector<16x8xf32> to vector<16x8xbf16>
    %54 = arith.truncf %52 : vector<16x8xf32> to vector<16x8xbf16>
    %cst_22 = arith.constant dense<0.000000e+00> : vector<16x16xf32>
    %55 = tpu.matmul %53, %54, %cst_22 {dimension_numbers = #tpu.dot_dimension_numbers<[1], [1], [0], [0], [0, 0, 1, 0], [], []>} : vector<16x8xbf16>, vector<16x8xbf16>, vector<16x16xf32> -> vector<16x16xf32>
    %56 = arith.addf %55, %28 : vector<16x16xf32>
    %cst_23 = arith.constant dense<0xFF800000> : vector<16xf32>
    %57 = vector.multi_reduction <maximumf>, %56, %cst_23 [1] : vector<16x16xf32> to vector<16xf32>
    %58 = vector.shape_cast %57 : vector<16xf32> to vector<16x1xf32>
    %59 = vector.broadcast %58 : vector<16x1xf32> to vector<16x16xf32>
    %60 = arith.subf %56, %59 : vector<16x16xf32>
    %61 = math.exp %60 : vector<16x16xf32>
    %cst_24 = arith.constant dense<0.000000e+00> : vector<16xf32>
    %62 = vector.multi_reduction <add>, %61, %cst_24 [1] : vector<16x16xf32> to vector<16xf32>
    %63 = vector.shape_cast %62 : vector<16xf32> to vector<16x1xf32>
    %64 = tpu.reciprocal %63 {approx = true} : vector<16x1xf32> -> vector<16x1xf32>
    %65 = vector.broadcast %64 : vector<16x1xf32> to vector<16x16xf32>
    %66 = arith.mulf %61, %65 : vector<16x16xf32>
    %67 = vector.extract_strided_slice %27 {offsets = [0, 32], sizes = [16, 32], strides = [1, 1]} : vector<16x128xf32> to vector<16x32xf32>
    %68 = arith.truncf %66 : vector<16x16xf32> to vector<16x16xbf16>
    %69 = arith.truncf %67 : vector<16x32xf32> to vector<16x32xbf16>
    %cst_25 = arith.constant dense<0.000000e+00> : vector<16x32xf32>
    %70 = tpu.matmul %68, %69, %cst_25 {dimension_numbers = #tpu.dot_dimension_numbers<[1], [0], [0], [1], [0, 0, 1, 1], [], []>} : vector<16x16xbf16>, vector<16x32xbf16>, vector<16x32xf32> -> vector<16x32xf32>
    %71 = arith.addf %50, %70 : vector<16x32xf32>
    %72 = vector.extract_strided_slice %22 {offsets = [0, 16], sizes = [16, 8], strides = [1, 1]} : vector<16x64xf32> to vector<16x8xf32>
    %73 = vector.extract_strided_slice %22 {offsets = [0, 48], sizes = [16, 8], strides = [1, 1]} : vector<16x64xf32> to vector<16x8xf32>
    %74 = arith.truncf %72 : vector<16x8xf32> to vector<16x8xbf16>
    %75 = arith.truncf %73 : vector<16x8xf32> to vector<16x8xbf16>
    %cst_26 = arith.constant dense<0.000000e+00> : vector<16x16xf32>
    %76 = tpu.matmul %74, %75, %cst_26 {dimension_numbers = #tpu.dot_dimension_numbers<[1], [1], [0], [0], [0, 0, 1, 0], [], []>} : vector<16x8xbf16>, vector<16x8xbf16>, vector<16x16xf32> -> vector<16x16xf32>
    %77 = arith.addf %76, %28 : vector<16x16xf32>
    %cst_27 = arith.constant dense<0xFF800000> : vector<16xf32>
    %78 = vector.multi_reduction <maximumf>, %77, %cst_27 [1] : vector<16x16xf32> to vector<16xf32>
    %79 = vector.shape_cast %78 : vector<16xf32> to vector<16x1xf32>
    %80 = vector.broadcast %79 : vector<16x1xf32> to vector<16x16xf32>
    %81 = arith.subf %77, %80 : vector<16x16xf32>
    %82 = math.exp %81 : vector<16x16xf32>
    %cst_28 = arith.constant dense<0.000000e+00> : vector<16xf32>
    %83 = vector.multi_reduction <add>, %82, %cst_28 [1] : vector<16x16xf32> to vector<16xf32>
    %84 = vector.shape_cast %83 : vector<16xf32> to vector<16x1xf32>
    %85 = tpu.reciprocal %84 {approx = true} : vector<16x1xf32> -> vector<16x1xf32>
    %86 = vector.broadcast %85 : vector<16x1xf32> to vector<16x16xf32>
    %87 = arith.mulf %82, %86 : vector<16x16xf32>
    %88 = vector.extract_strided_slice %27 {offsets = [0, 64], sizes = [16, 32], strides = [1, 1]} : vector<16x128xf32> to vector<16x32xf32>
    %89 = arith.truncf %87 : vector<16x16xf32> to vector<16x16xbf16>
    %90 = arith.truncf %88 : vector<16x32xf32> to vector<16x32xbf16>
    %cst_29 = arith.constant dense<0.000000e+00> : vector<16x32xf32>
    %91 = tpu.matmul %89, %90, %cst_29 {dimension_numbers = #tpu.dot_dimension_numbers<[1], [0], [0], [1], [0, 0, 1, 1], [], []>} : vector<16x16xbf16>, vector<16x32xbf16>, vector<16x32xf32> -> vector<16x32xf32>
    %92 = arith.addf %71, %91 : vector<16x32xf32>
    %93 = vector.extract_strided_slice %22 {offsets = [0, 24], sizes = [16, 8], strides = [1, 1]} : vector<16x64xf32> to vector<16x8xf32>
    %94 = vector.extract_strided_slice %22 {offsets = [0, 56], sizes = [16, 8], strides = [1, 1]} : vector<16x64xf32> to vector<16x8xf32>
    %95 = arith.truncf %93 : vector<16x8xf32> to vector<16x8xbf16>
    %96 = arith.truncf %94 : vector<16x8xf32> to vector<16x8xbf16>
    %cst_30 = arith.constant dense<0.000000e+00> : vector<16x16xf32>
    %97 = tpu.matmul %95, %96, %cst_30 {dimension_numbers = #tpu.dot_dimension_numbers<[1], [1], [0], [0], [0, 0, 1, 0], [], []>} : vector<16x8xbf16>, vector<16x8xbf16>, vector<16x16xf32> -> vector<16x16xf32>
    %98 = arith.addf %97, %28 : vector<16x16xf32>
    %cst_31 = arith.constant dense<0xFF800000> : vector<16xf32>
    %99 = vector.multi_reduction <maximumf>, %98, %cst_31 [1] : vector<16x16xf32> to vector<16xf32>
    %100 = vector.shape_cast %99 : vector<16xf32> to vector<16x1xf32>
    %101 = vector.broadcast %100 : vector<16x1xf32> to vector<16x16xf32>
    %102 = arith.subf %98, %101 : vector<16x16xf32>
    %103 = math.exp %102 : vector<16x16xf32>
    %cst_32 = arith.constant dense<0.000000e+00> : vector<16xf32>
    %104 = vector.multi_reduction <add>, %103, %cst_32 [1] : vector<16x16xf32> to vector<16xf32>
    %105 = vector.shape_cast %104 : vector<16xf32> to vector<16x1xf32>
    %106 = tpu.reciprocal %105 {approx = true} : vector<16x1xf32> -> vector<16x1xf32>
    %107 = vector.broadcast %106 : vector<16x1xf32> to vector<16x16xf32>
    %108 = arith.mulf %103, %107 : vector<16x16xf32>
    %109 = vector.extract_strided_slice %27 {offsets = [0, 96], sizes = [16, 32], strides = [1, 1]} : vector<16x128xf32> to vector<16x32xf32>
    %110 = arith.truncf %108 : vector<16x16xf32> to vector<16x16xbf16>
    %111 = arith.truncf %109 : vector<16x32xf32> to vector<16x32xbf16>
    %cst_33 = arith.constant dense<0.000000e+00> : vector<16x32xf32>
    %112 = tpu.matmul %110, %111, %cst_33 {dimension_numbers = #tpu.dot_dimension_numbers<[1], [0], [0], [1], [0, 0, 1, 1], [], []>} : vector<16x16xbf16>, vector<16x32xbf16>, vector<16x32xf32> -> vector<16x32xf32>
    %113 = arith.addf %92, %112 : vector<16x32xf32>
    %114 = arith.addf %0, %113 : vector<16x32xf32>
    %c0_34 = arith.constant 0 : index
    %c0_35 = arith.constant 0 : index
    %115 = vector.load %arg7[%c0_34, %c0_35] : memref<1x32xf32, #tpu.memory_space<vmem>>, vector<1x32xf32>
    %116 = vector.broadcast %115 : vector<1x32xf32> to vector<16x32xf32>
    %117 = arith.addf %114, %116 : vector<16x32xf32>
    %cst_36 = arith.constant dense<0.000000e+00> : vector<16xf32>
    %118 = vector.multi_reduction <add>, %117, %cst_36 [1] : vector<16x32xf32> to vector<16xf32>
    %119 = vector.shape_cast %118 : vector<16xf32> to vector<16x1xf32>
    %cst_37 = arith.constant 3.200000e+01 : f32
    %120 = vector.broadcast %cst_37 : f32 to vector<16x1xf32>
    %121 = arith.divf %119, %120 : vector<16x1xf32>
    %122 = vector.broadcast %121 : vector<16x1xf32> to vector<16x32xf32>
    %123 = arith.subf %117, %122 : vector<16x32xf32>
    %124 = arith.mulf %123, %123 : vector<16x32xf32>
    %cst_38 = arith.constant dense<0.000000e+00> : vector<16xf32>
    %125 = vector.multi_reduction <add>, %124, %cst_38 [1] : vector<16x32xf32> to vector<16xf32>
    %126 = vector.shape_cast %125 : vector<16xf32> to vector<16x1xf32>
    %cst_39 = arith.constant 3.200000e+01 : f32
    %127 = vector.broadcast %cst_39 : f32 to vector<16x1xf32>
    %128 = arith.divf %126, %127 : vector<16x1xf32>
    %cst_40 = arith.constant 9.99999974E-6 : f32
    %129 = vector.broadcast %cst_40 : f32 to vector<16x1xf32>
    %130 = arith.addf %128, %129 : vector<16x1xf32>
    %131 = math.rsqrt %130 : vector<16x1xf32>
    %132 = vector.broadcast %131 : vector<16x1xf32> to vector<16x32xf32>
    %133 = arith.mulf %123, %132 : vector<16x32xf32>
    %134 = arith.truncf %133 : vector<16x32xf32> to vector<16x32xbf16>
    %c0_41 = arith.constant 0 : index
    %c0_42 = arith.constant 0 : index
    %135 = vector.load %arg8[%c0_41, %c0_42] : memref<32x128xbf16, #tpu.memory_space<vmem>>, vector<32x128xbf16>
    %cst_43 = arith.constant dense<0.000000e+00> : vector<16x128xf32>
    %136 = tpu.matmul %134, %135, %cst_43 {dimension_numbers = #tpu.dot_dimension_numbers<[1], [0], [0], [1], [0, 0, 1, 1], [], []>} : vector<16x32xbf16>, vector<32x128xbf16>, vector<16x128xf32> -> vector<16x128xf32>
    %c0_44 = arith.constant 0 : index
    %c0_45 = arith.constant 0 : index
    %137 = vector.load %arg9[%c0_44, %c0_45] : memref<1x128xf32, #tpu.memory_space<vmem>>, vector<1x128xf32>
    %138 = vector.broadcast %137 : vector<1x128xf32> to vector<16x128xf32>
    %139 = arith.addf %136, %138 : vector<16x128xf32>
    %cst_46 = arith.constant 1.702000e+00 : f32
    %140 = vector.broadcast %cst_46 : f32 to vector<16x128xf32>
    %141 = arith.mulf %140, %139 : vector<16x128xf32>
    %142 = arith.negf %141 : vector<16x128xf32>
    %143 = math.exp %142 : vector<16x128xf32>
    %cst_47 = arith.constant 1.000000e+00 : f32
    %144 = vector.broadcast %cst_47 : f32 to vector<16x128xf32>
    %145 = arith.addf %144, %143 : vector<16x128xf32>
    %146 = arith.divf %144, %145 : vector<16x128xf32>
    %147 = arith.mulf %139, %146 : vector<16x128xf32>
    %148 = arith.truncf %147 : vector<16x128xf32> to vector<16x128xbf16>
    %c0_48 = arith.constant 0 : index
    %c0_49 = arith.constant 0 : index
    %149 = vector.load %arg10[%c0_48, %c0_49] : memref<128x32xbf16, #tpu.memory_space<vmem>>, vector<128x32xbf16>
    %cst_50 = arith.constant dense<0.000000e+00> : vector<16x32xf32>
    %150 = tpu.matmul %148, %149, %cst_50 {dimension_numbers = #tpu.dot_dimension_numbers<[1], [0], [0], [1], [0, 0, 1, 1], [], []>} : vector<16x128xbf16>, vector<128x32xbf16>, vector<16x32xf32> -> vector<16x32xf32>
    %c0_51 = arith.constant 0 : index
    %c0_52 = arith.constant 0 : index
    %151 = vector.load %arg11[%c0_51, %c0_52] : memref<1x32xf32, #tpu.memory_space<vmem>>, vector<1x32xf32>
    %152 = vector.broadcast %151 : vector<1x32xf32> to vector<16x32xf32>
    %153 = arith.addf %150, %152 : vector<16x32xf32>
    %154 = arith.addf %153, %117 : vector<16x32xf32>
    %c0_53 = arith.constant 0 : index
    %c0_54 = arith.constant 0 : index
    %155 = vector.load %arg12[%c0_53, %c0_54] : memref<16x32xf32, #tpu.memory_space<vmem>>, vector<16x32xf32>
    tpu.vector_store %arg12[%c0_53, %c0_54], %154 {strides = array<i32>} : memref<16x32xf32, #tpu.memory_space<vmem>>, vector<16x32xf32>,
    return
  }
  func.func @transform_0(%arg0: i32) -> (i32, i32) {
    %c0_i32 = arith.constant 0 : i32
    %c0_i32_0 = arith.constant 0 : i32
    %c0_i32_1 = arith.constant 0 : i32
    return %c0_i32, %c0_i32_0 : i32, i32
  }
  func.func @transform_1(%arg0: i32) -> (i32, i32) {
    %c0_i32 = arith.constant 0 : i32
    %c0_i32_0 = arith.constant 0 : i32
    %c0_i32_1 = arith.constant 0 : i32
    return %c0_i32, %c0_i32_0 : i32, i32
  }
  func.func @transform_2(%arg0: i32) -> (i32, i32) {
    %c0_i32 = arith.constant 0 : i32
    %c0_i32_0 = arith.constant 0 : i32
    %c0_i32_1 = arith.constant 0 : i32
    return %c0_i32, %c0_i32_0 : i32, i32
  }
  func.func @transform_3(%arg0: i32) -> (i32, i32) {
    %c0_i32 = arith.constant 0 : i32
    %c0_i32_0 = arith.constant 0 : i32
    %c0_i32_1 = arith.constant 0 : i32
    return %c0_i32, %c0_i32_0 : i32, i32
  }
  func.func @transform_4(%arg0: i32) -> (i32, i32) {
    %c0_i32 = arith.constant 0 : i32
    %c0_i32_0 = arith.constant 0 : i32
    %c0_i32_1 = arith.constant 0 : i32
    return %c0_i32, %c0_i32_0 : i32, i32
  }
  func.func @transform_5(%arg0: i32) -> (i32, i32) {
    %c0_i32 = arith.constant 0 : i32
    %c0_i32_0 = arith.constant 0 : i32
    %c0_i32_1 = arith.constant 0 : i32
    return %c0_i32, %c0_i32_0 : i32, i32
  }
  func.func @transform_6(%arg0: i32) -> (i32, i32) {
    %c0_i32 = arith.constant 0 : i32
    %c0_i32_0 = arith.constant 0 : i32
    %c0_i32_1 = arith.constant 0 : i32
    return %c0_i32, %c0_i32_0 : i32, i32
  }
  func.func @transform_7(%arg0: i32) -> (i32, i32) {
    %c0_i32 = arith.constant 0 : i32
    %c0_i32_0 = arith.constant 0 : i32
    %c0_i32_1 = arith.constant 0 : i32
    return %c0_i32, %c0_i32_0 : i32, i32
  }
  func.func @transform_8(%arg0: i32) -> (i32, i32) {
    %c0_i32 = arith.constant 0 : i32
    %c0_i32_0 = arith.constant 0 : i32
    %c0_i32_1 = arith.constant 0 : i32
    return %c0_i32, %c0_i32_0 : i32, i32
  }
  func.func @transform_9(%arg0: i32) -> (i32, i32) {
    %c0_i32 = arith.constant 0 : i32
    %c0_i32_0 = arith.constant 0 : i32
    %c0_i32_1 = arith.constant 0 : i32
    return %c0_i32, %c0_i32_0 : i32, i32
  }
  func.func @transform_10(%arg0: i32) -> (i32, i32) {
    %c0_i32 = arith.constant 0 : i32
    %c0_i32_0 = arith.constant 0 : i32
    %c0_i32_1 = arith.constant 0 : i32
    return %c0_i32, %c0_i32_0 : i32, i32
  }
  func.func @transform_11(%arg0: i32) -> (i32, i32) {
    %c0_i32 = arith.constant 0 : i32
    %c0_i32_0 = arith.constant 0 : i32
    %c0_i32_1 = arith.constant 0 : i32
    return %c0_i32, %c0_i32_0 : i32, i32
  }
}

</mosaic_0001>

<llo_original>
// kernel: tpu_custom_call.1
$region0: #{tpu_custom_call.1}
  #allocation0 [shape = 'u32[]', space=smem, size = 0x4, offset = 0x4, fixed_abs, tag = 'smem constant byte address 0x4 - core index']
  #allocation1 [shape = 'u32[72,128]{1,0:T(1,128)}', space=vmem, size = 0x9000, scoped, tag = 'internal scratch']
  %s0 = inlined_call_operand.vmem [shape: f32[16,32], index: 0, kind: input, shape index: {}]
  %s1 = inlined_call_operand.vmem [shape: f32[16,16], index: 1, kind: input, shape index: {}]
  %s2 = inlined_call_operand.vmem [shape: bf16[32,64], index: 2, kind: input, shape index: {}]
  %s3 = inlined_call_operand.vmem [shape: f32[1,64], index: 3, kind: input, shape index: {}]
  %s4 = inlined_call_operand.vmem [shape: bf16[32,128], index: 4, kind: input, shape index: {}]
  %s5 = inlined_call_operand.vmem [shape: f32[1,128], index: 5, kind: input, shape index: {}]
  %s6 = inlined_call_operand.vmem [shape: f32[1,32], index: 6, kind: input, shape index: {}]
  %s7 = inlined_call_operand.vmem [shape: bf16[32,128], index: 7, kind: input, shape index: {}]
  %s8 = inlined_call_operand.vmem [shape: f32[1,128], index: 8, kind: input, shape index: {}]
  %s9 = inlined_call_operand.vmem [shape: bf16[128,32], index: 9, kind: input, shape index: {}]
  %s10 = inlined_call_operand.vmem [shape: f32[1,32], index: 10, kind: input, shape index: {}]
  %s11 = inlined_call_operand.hbm [shape: f32[16,32], index: 11, kind: output, shape index: {}]
  %s12 = sld [smem:[#allocation0]]
  $region54: #{tpu_custom_call.1} parent=0
    _
  %s14 = ssub.s32 1, %s12
  %s15 = scalar_select 0, %s14, %s12
  $region1: #{tpu_custom_call.1} parent=0
    #allocation2 [shape = 'u8[8192]{0}', space=vmem, size = 0x2000, scoped, tag = 'output window, operand 0, single buffered']
    #allocation3 [shape = 's32[1]{0}', space=sflag, size = 0x4, scoped, tag = 'scoped memory for tpu_custom_call.1']
    %16 = vsyncpa [#allocation3], 0
    // Predicated region
    $region2: #{tpu_custom_call.1} parent=1 // pred_check
      _
    $region3: #{tpu_custom_call.1} parent=1 // pred_check_branch
      %18 = sbr.rel (0) target = $region5
    $region4: #{tpu_custom_call.1} parent=1 // pred_region
      _
    $region5: #{tpu_custom_call.1} parent=1 // pred_fallthru
      _
    // Predicated region
    $region6: #{tpu_custom_call.1} parent=1 // pred_check
      _
    $region7: #{tpu_custom_call.1} parent=1 // pred_check_branch
      %20 = sbr.rel (0) target = $region9
    $region8: #{tpu_custom_call.1} parent=1 // pred_region
      _
    $region9: #{tpu_custom_call.1} parent=1 // pred_fallthru
      _
    // Predicated region
    $region10: #{tpu_custom_call.1} parent=1 // pred_check
      _
    $region11: #{tpu_custom_call.1} parent=1 // pred_check_branch
      %22 = sbr.rel (0) target = $region13
    $region12: #{tpu_custom_call.1} parent=1 // pred_region
      _
    $region13: #{tpu_custom_call.1} parent=1 // pred_fallthru
      _
    // Predicated region
    $region14: #{tpu_custom_call.1} parent=1 // pred_check
      _
    $region15: #{tpu_custom_call.1} parent=1 // pred_check_branch
      %24 = sbr.rel (0) target = $region17
    $region16: #{tpu_custom_call.1} parent=1 // pred_region
      _
    $region17: #{tpu_custom_call.1} parent=1 // pred_fallthru
      _
    // Predicated region
    $region18: #{tpu_custom_call.1} parent=1 // pred_check
      _
    $region19: #{tpu_custom_call.1} parent=1 // pred_check_branch
      %26 = sbr.rel (0) target = $region21
    $region20: #{tpu_custom_call.1} parent=1 // pred_region
      _
    $region21: #{tpu_custom_call.1} parent=1 // pred_fallthru
      _
    // Predicated region
    $region22: #{tpu_custom_call.1} parent=1 // pred_check
      _
    $region23: #{tpu_custom_call.1} parent=1 // pred_check_branch
      %28 = sbr.rel (0) target = $region25
    $region24: #{tpu_custom_call.1} parent=1 // pred_region
      _
    $region25: #{tpu_custom_call.1} parent=1 // pred_fallthru
      _
    // Predicated region
    $region26: #{tpu_custom_call.1} parent=1 // pred_check
      _
    $region27: #{tpu_custom_call.1} parent=1 // pred_check_branch
      %30 = sbr.rel (0) target = $region29
    $region28: #{tpu_custom_call.1} parent=1 // pred_region
      _
    $region29: #{tpu_custom_call.1} parent=1 // pred_fallthru
      _
    // Predicated region
    $region30: #{tpu_custom_call.1} parent=1 // pred_check
      _
    $region31: #{tpu_custom_call.1} parent=1 // pred_check_branch
      %32 = sbr.rel (0) target = $region33
    $region32: #{tpu_custom_call.1} parent=1 // pred_region
      _
    $region33: #{tpu_custom_call.1} parent=1 // pred_fallthru
      _
    // Predicated region
    $region34: #{tpu_custom_call.1} parent=1 // pred_check
      _
    $region35: #{tpu_custom_call.1} parent=1 // pred_check_branch
      %34 = sbr.rel (0) target = $region37
    $region36: #{tpu_custom_call.1} parent=1 // pred_region
      _
    $region37: #{tpu_custom_call.1} parent=1 // pred_fallthru
      _
    // Predicated region
    $region38: #{tpu_custom_call.1} parent=1 // pred_check
      _
    $region39: #{tpu_custom_call.1} parent=1 // pred_check_branch
      %36 = sbr.rel (0) target = $region41
    $region40: #{tpu_custom_call.1} parent=1 // pred_region
      _
    $region41: #{tpu_custom_call.1} parent=1 // pred_fallthru
      _
    // Predicated region
    $region42: #{tpu_custom_call.1} parent=1 // pred_check
      _
    $region43: #{tpu_custom_call.1} parent=1 // pred_check_branch
      %38 = sbr.rel (0) target = $region45
    $region44: #{tpu_custom_call.1} parent=1 // pred_region
      _
    $region45: #{tpu_custom_call.1} parent=1 // pred_fallthru
      _
    %v40 = vld [vmem:[%s0] sm:$0xff]
    %v41 = vld [vmem:[%s0 + $0x8] sm:$0xff]
    %vm42 = vcmask 261120
    %v43 = vsel %vm42, %v40, 0.0
    %44 = vadd.xlane.f32.xlu0 %v43
    %v45 = vpop.xlane.xlu0 %44
    %v46 = vsel %vm42, %v41, 0.0
    %47 = vadd.xlane.f32.xlu0 %v46
    %v48 = vpop.xlane.xlu0 %47
    %v49 = vrcp.pop 32.0
    %v50 = vmul.f32 32.0, %v49
    %v51 = vsub.f32 1.0, %v50
    %v52 = vmul.f32 %v49, %v51
    %v53 = vadd.f32 %v49, %v52
    %vm54 = vweird.f32 %v49
    %v55 = vsel %vm54, %v49, %v53
    %v56 = vmul.f32 %v45, %v55
    %v57 = vmul.f32 %v48, %v55
    %v58 = vsub.f32 %v40, %v56
    %v59 = vsub.f32 %v41, %v57
    %v60 = vmul.f32 %v58, %v58
    %v61 = vmul.f32 %v59, %v59
    %v62 = vsel %vm42, %v60, 0.0
    %63 = vadd.xlane.f32.xlu0 %v62
    %v64 = vpop.xlane.xlu0 %63
    %v65 = vsel %vm42, %v61, 0.0
    %66 = vadd.xlane.f32.xlu0 %v65
    %v67 = vpop.xlane.xlu0 %66
    %v68 = vmul.f32 %v64, %v55
    %v69 = vmul.f32 %v67, %v55
    %v70 = vadd.f32 %v68, 1e-05
    %v71 = vadd.f32 %v69, 1e-05
    %v72 = vrsqrt.pop %v70
    %v73 = vmul.f32 %v72, %v70
    %v74 = vmul.f32 %v73, %v72
    %v75 = vmul.f32 0.5, %v74
    %v76 = vsub.f32 1.5, %v75
    %v77 = vmul.f32 %v72, %v76
    %vm78 = vweird.f32 %v70
    %vm79 = vweird.f32 %v72
    %vm80 = vmor %vm78, %vm79
    %v81 = vsel %vm80, %v72, %v77
    %v82 = vrsqrt.pop %v71
    %v83 = vmul.f32 %v82, %v71
    %v84 = vmul.f32 %v83, %v82
    %v85 = vmul.f32 0.5, %v84
    %v86 = vsub.f32 1.5, %v85
    %v87 = vmul.f32 %v82, %v86
    %vm88 = vweird.f32 %v71
    %vm89 = vweird.f32 %v82
    %vm90 = vmor %vm88, %vm89
    %v91 = vsel %vm90, %v82, %v87
    %v92 = vmul.f32 %v58, %v81
    %v93 = vmul.f32 %v59, %v91
    %v94 = vpack.c.bf16 %v93, %v92
    %v95 = vld [vmem:[%s2] sm:$0xf]
    %v96 = vld [vmem:[%s2 + $0x4] sm:$0xf]
    %v97 = vld [vmem:[%s2 + $0x8] sm:$0xf]
    %v98 = vld [vmem:[%s2 + $0xc] sm:$0xf]
    %v99 = vld [vmem:[%s3] sm:$0x1]
    %v101 = vperm.slane %v99, 0
    %v107 = vunpack.c.l.b16 %v95
    %v108 = vunpack.c.l.b16 %v96
    %v109 = vunpack.c.l.b16 %v97
    %v110 = vunpack.c.l.b16 %v98
    %v111 = vpack.c.b16 %v108, %v107
    %v112 = vpack.c.b16 %v110, %v109
    %v116 = vsel %vm42, %v94, 0
    %118 = vmatpush.bf16.msra.mxu0 0
    %119 = vmatpush.bf16.msra.mxu0 0
    %120 = vmatpush.bf16.msra.mxu0 0
    %121 = vmatpush.bf16.msra.mxu0 0
    %122 = vmatpush.bf16.msra.mxu0 0
    %123 = vmatpush.bf16.msra.mxu0 0
    %124 = vmatpush.bf16.msra.mxu0 %v112
    %125 = vmatpush.bf16.msra.mxu0 %v111
    %126 = vmatmul.bf16.gmra.mxu0 %v116
    %v127 = vpop.f32.mrf.mxu0
    %v128 = vadd.f32 %v101, %v127
    %v129 = vpop.f32.mrf.mxu0
    %v130 = vadd.f32 %v101, %v129
    %131 = vdwg.mxu0
    %v132 = vld [vmem:[%s4] sm:$0xf]
    %v133 = vld [vmem:[%s4 + $0x4] sm:$0xf]
    %v134 = vld [vmem:[%s4 + $0x8] sm:$0xf]
    %v135 = vld [vmem:[%s4 + $0xc] sm:$0xf]
    %v136 = vld [vmem:[%s5] sm:$0x1]
    %v138 = vperm.slane %v136, 0
    %v144 = vunpack.c.l.b16 %v132
    %v145 = vunpack.c.l.b16 %v133
    %v146 = vunpack.c.l.b16 %v134
    %v147 = vunpack.c.l.b16 %v135
    %v148 = vpack.c.b16 %v145, %v144
    %v149 = vpack.c.b16 %v147, %v146
    %152 = vmatpush.bf16.msra.mxu0 0
    %153 = vmatpush.bf16.msra.mxu0 0
    %154 = vmatpush.bf16.msra.mxu0 0
    %155 = vmatpush.bf16.msra.mxu0 0
    %156 = vmatpush.bf16.msra.mxu0 0
    %157 = vmatpush.bf16.msra.mxu0 0
    %158 = vmatpush.bf16.msra.mxu0 %v149
    %159 = vmatpush.bf16.msra.mxu0 %v148
    %160 = vmatmul.bf16.gmra.mxu0 %v116
    %v161 = vpop.f32.mrf.mxu0
    %v162 = vadd.f32 %v138, %v161
    %v163 = vpop.f32.mrf.mxu0
    %v164 = vadd.f32 %v138, %v163
    %165 = vdwg.mxu0
    %v166 = vld [vmem:[%s1] sm:$0xff]
    %v167 = vld [vmem:[%s1 + $0x8] sm:$0xff]
    %v168 = vpack.c.bf16 %v130, %v128
    %170 = vrot.lane.b32.xlu0 %v168, 96
    %v171 = vpop.permute.xlu0 %170
    %vm172 = vcmask 64512
    %v174 = vsel %vm172, %v168, 0
    %v177 = vsel %vm172, %v171, 0
    %179 = vmatpush.bf16.xpose.msra.mxu0 0
    %180 = vmatpush.bf16.xpose.msra.mxu0 0
    %181 = vmatpush.bf16.xpose.msra.mxu0 0
    %182 = vmatpush.bf16.xpose.msra.mxu0 0
    %183 = vmatpush.bf16.xpose.msra.mxu0 0
    %184 = vmatpush.bf16.xpose.msra.mxu0 0
    %185 = vmatpush.bf16.xpose.msra.mxu0 0
    %186 = vmatpush.bf16.xpose.msra.mxu0 %v177
    %187 = vmatmul.bf16.gmra.mxu0 %v174
    %v188 = vpop.f32.mrf.mxu0
    %v189 = vadd.f32 %v166, %v188
    %v190 = vpop.f32.mrf.mxu0
    %v191 = vadd.f32 %v167, %v190
    %192 = vdwg.mxu0
    %vm193 = vcmask 130048
    %v194 = vsel %vm193, %v189, -inf
    %195 = vmax.xlane.f32.xlu0 %v194
    %v196 = vpop.xlane.xlu0 %195
    %v197 = vsel %vm193, %v191, -inf
    %198 = vmax.xlane.f32.xlu0 %v197
    %v199 = vpop.xlane.xlu0 %198
    %v200 = vsub.f32 %v189, %v196
    %v201 = vsub.f32 %v191, %v199
    %v202 = vmul.f32 %v200, 1.442695
    %v203 = vpow.pop %v202
    %v204 = vmul.f32 %v201, 1.442695
    %v205 = vpow.pop %v204
    %v206 = vsel %vm193, %v203, 0.0
    %207 = vadd.xlane.f32.xlu0 %v206
    %v208 = vpop.xlane.xlu0 %207
    %v209 = vsel %vm193, %v205, 0.0
    %210 = vadd.xlane.f32.xlu0 %v209
    %v211 = vpop.xlane.xlu0 %210
    %v212 = vrcp.pop %v208
    %v213 = vrcp.pop %v211
    %v214 = vmul.f32 %v203, %v212
    %v215 = vmul.f32 %v205, %v213
    %v216 = vpack.c.bf16 %v215, %v214
    %v217 = vpack.c.bf16 %v164, %v162
    %218 = vrot.lane.b32.xlu0 %v168, 120
    %v219 = vpop.permute.xlu0 %218
    %220 = vrot.lane.b32.xlu0 %v168, 88
    %v221 = vpop.permute.xlu0 %220
    %v223 = vsel %vm172, %v219, 0
    %v226 = vsel %vm172, %v221, 0
    %228 = vmatpush.bf16.xpose.msra.mxu0 0
    %229 = vmatpush.bf16.xpose.msra.mxu0 0
    %230 = vmatpush.bf16.xpose.msra.mxu0 0
    %231 = vmatpush.bf16.xpose.msra.mxu0 0
    %232 = vmatpush.bf16.xpose.msra.mxu0 0
    %233 = vmatpush.bf16.xpose.msra.mxu0 0
    %234 = vmatpush.bf16.xpose.msra.mxu0 0
    %235 = vmatpush.bf16.xpose.msra.mxu0 %v226
    %236 = vmatmul.bf16.gmra.mxu0 %v223
    %v237 = vpop.f32.mrf.mxu0
    %v238 = vadd.f32 %v166, %v237
    %v239 = vpop.f32.mrf.mxu0
    %v240 = vadd.f32 %v167, %v239
    %241 = vdwg.mxu0
    %v242 = vsel %vm193, %v238, -inf
    %243 = vmax.xlane.f32.xlu0 %v242
    %v244 = vpop.xlane.xlu0 %243
    %v245 = vsel %vm193, %v240, -inf
    %246 = vmax.xlane.f32.xlu0 %v245
    %v247 = vpop.xlane.xlu0 %246
    %v248 = vsub.f32 %v238, %v244
    %v249 = vsub.f32 %v240, %v247
    %v250 = vmul.f32 %v248, 1.442695
    %v251 = vpow.pop %v250
    %v252 = vmul.f32 %v249, 1.442695
    %v253 = vpow.pop %v252
    %v254 = vsel %vm193, %v251, 0.0
    %255 = vadd.xlane.f32.xlu0 %v254
    %v256 = vpop.xlane.xlu0 %255
    %v257 = vsel %vm193, %v253, 0.0
    %258 = vadd.xlane.f32.xlu0 %v257
    %v259 = vpop.xlane.xlu0 %258
    %v260 = vrcp.pop %v256
    %v261 = vrcp.pop %v259
    %v262 = vmul.f32 %v251, %v260
    %v263 = vmul.f32 %v253, %v261
    %v264 = vpack.c.bf16 %v263, %v262
    %266 = vrot.lane.b32.xlu0 %v217, 96
    %v267 = vpop.permute.xlu0 %266
    %v270 = vsel %vm193, %v264, 0
    %272 = vmatpush.bf16.msra.mxu0 0
    %273 = vmatpush.bf16.msra.mxu0 0
    %274 = vmatpush.bf16.msra.mxu0 0
    %275 = vmatpush.bf16.msra.mxu0 0
    %276 = vmatpush.bf16.msra.mxu0 0
    %277 = vmatpush.bf16.msra.mxu0 0
    %278 = vmatpush.bf16.msra.mxu0 0
    %279 = vmatpush.bf16.msra.mxu0 %v267
    %280 = vmatmul.bf16.gmra.mxu0 %v270
    %v281 = vpop.f32.mrf.mxu0
    %v282 = vadd.f32 0.0, %v281
    %v283 = vpop.f32.mrf.mxu0
    %v284 = vadd.f32 0.0, %v283
    %285 = vdwg.mxu0
    %v287 = vsel %vm193, %v216, 0
    %289 = vmatpush.bf16.msra.mxu0 0
    %290 = vmatpush.bf16.msra.mxu0 0
    %291 = vmatpush.bf16.msra.mxu0 0
    %292 = vmatpush.bf16.msra.mxu0 0
    %293 = vmatpush.bf16.msra.mxu0 0
    %294 = vmatpush.bf16.msra.mxu0 0
    %295 = vmatpush.bf16.msra.mxu0 0
    %296 = vmatpush.bf16.msra.mxu0 %v217
    %297 = vmatmul.bf16.gmra.mxu0 %v287
    %v298 = vpop.f32.mrf.mxu0
    %v299 = vadd.f32 %v282, %v298
    %v300 = vpop.f32.mrf.mxu0
    %v301 = vadd.f32 %v284, %v300
    %302 = vdwg.mxu0
    %303 = vrot.lane.b32.xlu0 %v168, 112
    %v304 = vpop.permute.xlu0 %303
    %305 = vrot.lane.b32.xlu0 %v168, 80
    %v306 = vpop.permute.xlu0 %305
    %v308 = vsel %vm172, %v304, 0
    %v311 = vsel %vm172, %v306, 0
    %313 = vmatpush.bf16.xpose.msra.mxu0 0
    %314 = vmatpush.bf16.xpose.msra.mxu0 0
    %315 = vmatpush.bf16.xpose.msra.mxu0 0
    %316 = vmatpush.bf16.xpose.msra.mxu0 0
    %317 = vmatpush.bf16.xpose.msra.mxu0 0
    %318 = vmatpush.bf16.xpose.msra.mxu0 0
    %319 = vmatpush.bf16.xpose.msra.mxu0 0
    %320 = vmatpush.bf16.xpose.msra.mxu0 %v311
    %321 = vmatmul.bf16.gmra.mxu0 %v308
    %v322 = vpop.f32.mrf.mxu0
    %v323 = vadd.f32 %v166, %v322
    %v324 = vpop.f32.mrf.mxu0
    %v325 = vadd.f32 %v167, %v324
    %326 = vdwg.mxu0
    %v327 = vsel %vm193, %v323, -inf
    %328 = vmax.xlane.f32.xlu0 %v327
    %v329 = vpop.xlane.xlu0 %328
    %v330 = vsel %vm193, %v325, -inf
    %331 = vmax.xlane.f32.xlu0 %v330
    %v332 = vpop.xlane.xlu0 %331
    %v333 = vsub.f32 %v323, %v329
    %v334 = vsub.f32 %v325, %v332
    %v335 = vmul.f32 %v333, 1.442695
    %v336 = vpow.pop %v335
    %v337 = vmul.f32 %v334, 1.442695
    %v338 = vpow.pop %v337
    %v339 = vsel %vm193, %v336, 0.0
    %340 = vadd.xlane.f32.xlu0 %v339
    %v341 = vpop.xlane.xlu0 %340
    %v342 = vsel %vm193, %v338, 0.0
    %343 = vadd.xlane.f32.xlu0 %v342
    %v344 = vpop.xlane.xlu0 %343
    %v345 = vrcp.pop %v341
    %v346 = vrcp.pop %v344
    %v347 = vmul.f32 %v336, %v345
    %v348 = vmul.f32 %v338, %v346
    %v349 = vpack.c.bf16 %v348, %v347
    %350 = vrot.lane.b32.xlu0 %v217, 64
    %v351 = vpop.permute.xlu0 %350
    %v354 = vsel %vm193, %v349, 0
    %356 = vmatpush.bf16.msra.mxu0 0
    %357 = vmatpush.bf16.msra.mxu0 0
    %358 = vmatpush.bf16.msra.mxu0 0
    %359 = vmatpush.bf16.msra.mxu0 0
    %360 = vmatpush.bf16.msra.mxu0 0
    %361 = vmatpush.bf16.msra.mxu0 0
    %362 = vmatpush.bf16.msra.mxu0 0
    %363 = vmatpush.bf16.msra.mxu0 %v351
    %364 = vmatmul.bf16.gmra.mxu0 %v354
    %v365 = vpop.f32.mrf.mxu0
    %v366 = vadd.f32 0.0, %v365
    %v367 = vpop.f32.mrf.mxu0
    %v368 = vadd.f32 0.0, %v367
    %369 = vdwg.mxu0
    %v370 = vadd.f32 %v299, %v366
    %v371 = vadd.f32 %v301, %v368
    %372 = vrot.lane.b32.xlu0 %v168, 104
    %v373 = vpop.permute.xlu0 %372
    %374 = vrot.lane.b32.xlu0 %v168, 72
    %v375 = vpop.permute.xlu0 %374
    %v377 = vsel %vm172, %v373, 0
    %v380 = vsel %vm172, %v375, 0
    %382 = vmatpush.bf16.xpose.msra.mxu0 0
    %383 = vmatpush.bf16.xpose.msra.mxu0 0
    %384 = vmatpush.bf16.xpose.msra.mxu0 0
    %385 = vmatpush.bf16.xpose.msra.mxu0 0
    %386 = vmatpush.bf16.xpose.msra.mxu0 0
    %387 = vmatpush.bf16.xpose.msra.mxu0 0
    %388 = vmatpush.bf16.xpose.msra.mxu0 0
    %389 = vmatpush.bf16.xpose.msra.mxu0 %v380
    %390 = vmatmul.bf16.gmra.mxu0 %v377
    %v391 = vpop.f32.mrf.mxu0
    %v392 = vadd.f32 %v166, %v391
    %v393 = vpop.f32.mrf.mxu0
    %v394 = vadd.f32 %v167, %v393
    %395 = vdwg.mxu0
    %v396 = vsel %vm193, %v392, -inf
    %397 = vmax.xlane.f32.xlu0 %v396
    %v398 = vpop.xlane.xlu0 %397
    %v399 = vsel %vm193, %v394, -inf
    %400 = vmax.xlane.f32.xlu0 %v399
    %v401 = vpop.xlane.xlu0 %400
    %v402 = vsub.f32 %v392, %v398
    %v403 = vsub.f32 %v394, %v401
    %v404 = vmul.f32 %v402, 1.442695
    %v405 = vpow.pop %v404
    %v406 = vmul.f32 %v403, 1.442695
    %v407 = vpow.pop %v406
    %v408 = vsel %vm193, %v405, 0.0
    %409 = vadd.xlane.f32.xlu0 %v408
    %v410 = vpop.xlane.xlu0 %409
    %v411 = vsel %vm193, %v407, 0.0
    %412 = vadd.xlane.f32.xlu0 %v411
    %v413 = vpop.xlane.xlu0 %412
    %v414 = vrcp.pop %v410
    %v415 = vrcp.pop %v413
    %v416 = vmul.f32 %v405, %v414
    %v417 = vmul.f32 %v407, %v415
    %v418 = vpack.c.bf16 %v417, %v416
    %419 = vrot.lane.b32.xlu0 %v217, 32
    %v420 = vpop.permute.xlu0 %419
    %v423 = vsel %vm193, %v418, 0
    %425 = vmatpush.bf16.msra.mxu0 0
    %426 = vmatpush.bf16.msra.mxu0 0
    %427 = vmatpush.bf16.msra.mxu0 0
    %428 = vmatpush.bf16.msra.mxu0 0
    %429 = vmatpush.bf16.msra.mxu0 0
    %430 = vmatpush.bf16.msra.mxu0 0
    %431 = vmatpush.bf16.msra.mxu0 0
    %432 = vmatpush.bf16.msra.mxu0 %v420
    %433 = vmatmul.bf16.gmra.mxu0 %v423
    %v434 = vpop.f32.mrf.mxu0
    %v435 = vadd.f32 0.0, %v434
    %v436 = vpop.f32.mrf.mxu0
    %v437 = vadd.f32 0.0, %v436
    %438 = vdwg.mxu0
    %v439 = vadd.f32 %v370, %v435
    %v440 = vadd.f32 %v371, %v437
    %v441 = vadd.f32 %v40, %v439
    %v442 = vadd.f32 %v41, %v440
    %v443 = vld [vmem:[%s6] sm:$0x1]
    %v445 = vperm.slane %v443, 0
    %v447 = vadd.f32 %v441, %v445
    %v448 = vadd.f32 %v442, %v445
    %v449 = vsel %vm42, %v447, 0.0
    %450 = vadd.xlane.f32.xlu0 %v449
    %v451 = vpop.xlane.xlu0 %450
    %v452 = vsel %vm42, %v448, 0.0
    %453 = vadd.xlane.f32.xlu0 %v452
    %v454 = vpop.xlane.xlu0 %453
    %v455 = vmul.f32 %v451, %v55
    %v456 = vmul.f32 %v454, %v55
    %v457 = vsub.f32 %v447, %v455
    %v458 = vsub.f32 %v448, %v456
    %v459 = vmul.f32 %v457, %v457
    %v460 = vmul.f32 %v458, %v458
    %v461 = vsel %vm42, %v459, 0.0
    %462 = vadd.xlane.f32.xlu0 %v461
    %v463 = vpop.xlane.xlu0 %462
    %v464 = vsel %vm42, %v460, 0.0
    %465 = vadd.xlane.f32.xlu0 %v464
    %v466 = vpop.xlane.xlu0 %465
    %v467 = vmul.f32 %v463, %v55
    %v468 = vmul.f32 %v466, %v55
    %v469 = vadd.f32 %v467, 1e-05
    %v470 = vadd.f32 %v468, 1e-05
    %v471 = vrsqrt.pop %v469
    %v472 = vmul.f32 %v471, %v469
    %v473 = vmul.f32 %v472, %v471
    %v474 = vmul.f32 0.5, %v473
    %v475 = vsub.f32 1.5, %v474
    %v476 = vmul.f32 %v471, %v475
    %vm477 = vweird.f32 %v469
    %vm478 = vweird.f32 %v471
    %vm479 = vmor %vm477, %vm478
    %v480 = vsel %vm479, %v471, %v476
    %v481 = vrsqrt.pop %v470
    %v482 = vmul.f32 %v481, %v470
    %v483 = vmul.f32 %v482, %v481
    %v484 = vmul.f32 0.5, %v483
    %v485 = vsub.f32 1.5, %v484
    %v486 = vmul.f32 %v481, %v485
    %vm487 = vweird.f32 %v470
    %vm488 = vweird.f32 %v481
    %vm489 = vmor %vm487, %vm488
    %v490 = vsel %vm489, %v481, %v486
    %v491 = vmul.f32 %v457, %v480
    %v492 = vmul.f32 %v458, %v490
    %v493 = vpack.c.bf16 %v492, %v491
    %v494 = vld [vmem:[%s7] sm:$0xf]
    %v495 = vld [vmem:[%s7 + $0x4] sm:$0xf]
    %v496 = vld [vmem:[%s7 + $0x8] sm:$0xf]
    %v497 = vld [vmem:[%s7 + $0xc] sm:$0xf]
    %v498 = vld [vmem:[%s8] sm:$0x1]
    %v500 = vperm.slane %v498, 0
    %v506 = vunpack.c.l.b16 %v494
    %v507 = vunpack.c.l.b16 %v495
    %v508 = vunpack.c.l.b16 %v496
    %v509 = vunpack.c.l.b16 %v497
    %v510 = vpack.c.b16 %v507, %v506
    %v511 = vpack.c.b16 %v509, %v508
    %v515 = vsel %vm42, %v493, 0
    %517 = vmatpush.bf16.msra.mxu0 0
    %518 = vmatpush.bf16.msra.mxu0 0
    %519 = vmatpush.bf16.msra.mxu0 0
    %520 = vmatpush.bf16.msra.mxu0 0
    %521 = vmatpush.bf16.msra.mxu0 0
    %522 = vmatpush.bf16.msra.mxu0 0
    %523 = vmatpush.bf16.msra.mxu0 %v511
    %524 = vmatpush.bf16.msra.mxu0 %v510
    %525 = vmatmul.bf16.gmra.mxu0 %v515
    %v526 = vpop.f32.mrf.mxu0
    %v527 = vadd.f32 %v500, %v526
    %v528 = vpop.f32.mrf.mxu0
    %v529 = vadd.f32 %v500, %v528
    %530 = vdwg.mxu0
    %v531 = vmul.f32 %v527, 1.702
    %v532 = vmul.f32 %v529, 1.702
    %v533 = vxor.u32 %v531, 2147483648
    %v534 = vxor.u32 %v532, 2147483648
    %v535 = vmul.f32 %v533, 1.442695
    %v536 = vpow.pop %v535
    %v537 = vmul.f32 %v534, 1.442695
    %v538 = vpow.pop %v537
    %v539 = vadd.f32 %v536, 1.0
    %v540 = vadd.f32 %v538, 1.0
    %v541 = vrcp.pop %v539
    %v542 = vmul.f32 %v539, %v541
    %v543 = vsub.f32 1.0, %v542
    %v544 = vmul.f32 %v541, %v543
    %v545 = vadd.f32 %v541, %v544
    %vm546 = vweird.f32 %v539
    %vm547 = vweird.f32 %v541
    %vm548 = vmor %vm546, %vm547
    %v549 = vsel %vm548, %v541, %v545
    %v550 = vand.u32 2147483647, %v539
    %vm551 = vcmp.eq.f32.partialorder %v550, 8.507059e+37
    %v552 = vand.u32 %v539, 2147483648
    %v553 = vor.u32 1.1754944e-38, %v552
    %v554 = vsel %vm551, %v553, %v549
    %v555 = vmul.f32 1.0, %v554
    %v556 = vrcp.pop %v540
    %v557 = vmul.f32 %v540, %v556
    %v558 = vsub.f32 1.0, %v557
    %v559 = vmul.f32 %v556, %v558
    %v560 = vadd.f32 %v556, %v559
    %vm561 = vweird.f32 %v540
    %vm562 = vweird.f32 %v556
    %vm563 = vmor %vm561, %vm562
    %v564 = vsel %vm563, %v556, %v560
    %v565 = vand.u32 2147483647, %v540
    %vm566 = vcmp.eq.f32.partialorder %v565, 8.507059e+37
    %v567 = vand.u32 %v540, 2147483648
    %v568 = vor.u32 1.1754944e-38, %v567
    %v569 = vsel %vm566, %v568, %v564
    %v570 = vmul.f32 1.0, %v569
    %v571 = vmul.f32 %v527, %v555
    %v572 = vmul.f32 %v529, %v570
    %v573 = vpack.c.bf16 %v572, %v571
    %v574 = vld [vmem:[%s9] sm:$0xf]
    %v575 = vld [vmem:[%s9 + $0x4] sm:$0xf]
    %v576 = vld [vmem:[%s9 + $0x8] sm:$0xf]
    %v577 = vld [vmem:[%s9 + $0xc] sm:$0xf]
    %v578 = vld [vmem:[%s9 + $0x10] sm:$0xf]
    %v579 = vld [vmem:[%s9 + $0x14] sm:$0xf]
    %v580 = vld [vmem:[%s9 + $0x18] sm:$0xf]
    %v581 = vld [vmem:[%s9 + $0x1c] sm:$0xf]
    %v582 = vld [vmem:[%s9 + $0x20] sm:$0xf]
    %v583 = vld [vmem:[%s9 + $0x24] sm:$0xf]
    %v584 = vld [vmem:[%s9 + $0x28] sm:$0xf]
    %v585 = vld [vmem:[%s9 + $0x2c] sm:$0xf]
    %v586 = vld [vmem:[%s9 + $0x30] sm:$0xf]
    %v587 = vld [vmem:[%s9 + $0x34] sm:$0xf]
    %v588 = vld [vmem:[%s9 + $0x38] sm:$0xf]
    %v589 = vld [vmem:[%s9 + $0x3c] sm:$0xf]
    %v590 = vld [vmem:[%s10] sm:$0x1]
    %v592 = vperm.slane %v590, 0
    %v610 = vunpack.c.l.b16 %v574
    %v611 = vunpack.c.l.b16 %v575
    %v612 = vunpack.c.l.b16 %v576
    %v613 = vunpack.c.l.b16 %v577
    %v614 = vunpack.c.l.b16 %v578
    %v615 = vunpack.c.l.b16 %v579
    %v616 = vunpack.c.l.b16 %v580
    %v617 = vunpack.c.l.b16 %v581
    %v618 = vunpack.c.l.b16 %v582
    %v619 = vunpack.c.l.b16 %v583
    %v620 = vunpack.c.l.b16 %v584
    %v621 = vunpack.c.l.b16 %v585
    %v622 = vunpack.c.l.b16 %v586
    %v623 = vunpack.c.l.b16 %v587
    %v624 = vunpack.c.l.b16 %v588
    %v625 = vunpack.c.l.b16 %v589
    %v626 = vpack.c.b16 %v611, %v610
    %v627 = vpack.c.b16 %v613, %v612
    %v628 = vpack.c.b16 %v615, %v614
    %v629 = vpack.c.b16 %v617, %v616
    %v630 = vpack.c.b16 %v619, %v618
    %v631 = vpack.c.b16 %v621, %v620
    %v632 = vpack.c.b16 %v623, %v622
    %v633 = vpack.c.b16 %v625, %v624
    %642 = vmatpush.bf16.msra.mxu0 %v633
    %643 = vmatpush.bf16.msra.mxu0 %v632
    %644 = vmatpush.bf16.msra.mxu0 %v631
    %645 = vmatpush.bf16.msra.mxu0 %v630
    %646 = vmatpush.bf16.msra.mxu0 %v629
    %647 = vmatpush.bf16.msra.mxu0 %v628
    %648 = vmatpush.bf16.msra.mxu0 %v627
    %649 = vmatpush.bf16.msra.mxu0 %v626
    %650 = vmatmul.bf16.gmra.mxu0 %v573
    %v651 = vpop.f32.mrf.mxu0
    %v652 = vadd.f32 %v592, %v651
    %v653 = vpop.f32.mrf.mxu0
    %v654 = vadd.f32 %v592, %v653
    %655 = vdwg.mxu0
    %v656 = vadd.f32 %v652, %v447
    %v657 = vadd.f32 %v654, %v448
    %658 = vst.msk [vmem:[#allocation2] sm:$0xff] %vm42, %v656
    %659 = vst.msk [vmem:[#allocation2 + $0x8] sm:$0xff] %vm42, %v657
    // Predicated region
    $region46: #{tpu_custom_call.1} parent=1 // pred_check
      _
    $region47: #{tpu_custom_call.1} parent=1 // pred_check_branch
      %661 = sbr.rel (0) target = $region49
    $region48: #{tpu_custom_call.1} parent=1 // pred_region
      %663 = vsyncadd [#allocation3], 0
      %s664 = sshll.u32 [#allocation2], 4
      %s665 = int_to_ptr.vmem [resolvable:$true] %s664
      %s666 = sshll.u32 %s11, 4
      %s667 = int_to_ptr.hbm [resolvable:$true] %s666
      %672 = dma.vmem_to_hbm [thread:$0]  %s665, 256, %s667, [#allocation3], 128, 128, 8
    $region49: #{tpu_custom_call.1} parent=1 // pred_fallthru
      _
    // Predicated region
    $region50: #{tpu_custom_call.1} parent=1 // pred_check
      _
    $region51: #{tpu_custom_call.1} parent=1 // pred_check_branch
      %674 = sbr.rel (0) target = $region53
    $region52: #{tpu_custom_call.1} parent=1 // pred_region
      %676 = dma.done [#allocation3], 256
    $region53: #{tpu_custom_call.1} parent=1 // pred_fallthru
      _
    %677 = vsyncpa [#allocation3], 1

</llo_original>
